<compile_context>
chip_gen: v5e
topology: v5e:2x2
jax: 0.10.0
libtpu: 0.0.40
codegen_flags: <defaults>
</compile_context>

<pallas_src>
import numpy as np

import jax
import jax.numpy as jnp
from jax.experimental import pallas as pl
from jax.experimental.pallas import tpu as pltpu


# ----------------------------------------------------------------------------
# Deterministic parameter construction (mirrors GramSchmidtTransform.__init__)
# ----------------------------------------------------------------------------
def gram_schmidt(vecs):
    """vecs: (n, 1, h, w). Orthonormalize treating each (1, h, w) as a vector."""
    out = []
    for i in range(vecs.shape[0]):
        x = vecs[i]
        for y in out:
            x = x - (jnp.sum(y * x) / jnp.sum(y * y)) * y
        x = x / jnp.sqrt(jnp.sum(x * x))
        out.append(x)
    return jnp.stack(out)


def initialize_orthogonal_filters(key, c, h, w):
    if h * w < c:
        n = c // (h * w)
        keys = jax.random.split(key, n)
        grams = [gram_schmidt(jax.random.uniform(k, (h * w, 1, h, w), jnp.float32))
                 for k in keys]
        return jnp.concatenate(grams, axis=0)
    else:
        return gram_schmidt(jax.random.uniform(key, (c, 1, h, w), jnp.float32))


def build_constant_filter(key, c, h):
    # GramSchmidtTransform(c, h): random orthonormal filters viewed as (c, h, h)
    return initialize_orthogonal_filters(key, c, h, h).reshape(c, h, h)


# ----------------------------------------------------------------------------
# adaptive_avg_pool2d folded into the filter (pooling is linear, so fold its
# adjoint into the constant filter once; x is then read in a single pass).
# ----------------------------------------------------------------------------
def _adaptive_pool_matrix(out_size, in_size):
    """(out_size, in_size) matrix M with pooled = M @ x along one spatial dim.
    Matches torch.nn.functional.adaptive_avg_pool2d bin boundaries."""
    m = np.zeros((out_size, in_size), dtype=np.float32)
    for o in range(out_size):
        start = (o * in_size) // out_size
        end = -((-(o + 1) * in_size) // out_size)  # ceil((o+1)*in/out)
        m[o, start:end] = 1.0 / (end - start)
    return jnp.asarray(m)


def _fold_pool_into_filter(f, hi, wi):
    """f: (C, H, W) -> expanded filter (C, hi, wi) such that
    sum_{ij} f_exp[c,i,j] * x[b,c,i,j] == sum_{IJ} f[c,I,J] * pool(x)[b,c,I,J]."""
    _, H, W = f.shape
    mh = _adaptive_pool_matrix(H, hi)   # (H, hi)
    mw = _adaptive_pool_matrix(W, wi)   # (W, wi)
    return jnp.einsum('cIJ,Ii,Jj->cij', f, mh, mw)


# ----------------------------------------------------------------------------
# Pallas kernel: out[b, c] = sum_k x[b, c, k] * f[c, k]
# ----------------------------------------------------------------------------
def _attention_kernel(x_ref, f_ref, o_ref):
    x = x_ref[...].astype(jnp.float32)          # (TB, C, HW)
    f = f_ref[...].astype(jnp.float32)          # (C, HW)  rank-broadcast over TB
    o_ref[...] = jnp.sum(x * f, axis=-1).astype(o_ref.dtype)   # (TB, C)


def _pick_batch_tile(b, c, hw, x_itemsize, budget_bytes=24 << 20):
    """Largest batch tile (full B, or a multiple of 8) that keeps the
    double-buffered x/out tiles plus the resident filter under a budget that
    is safe on every TPU generation (v7x has only 64 MiB VMEM per core)."""
    per_row = 2 * c * hw * x_itemsize + 2 * c * 4   # x (2 bufs) + out (2 bufs)
    fixed = 2 * c * hw * 4                          # filter (f32, 2 bufs)
    tb = (budget_bytes - fixed) // per_row
    if tb >= b or b <= 8:
        return b
    return int(max(8, (tb // 8) * 8))


def attention_forward(constant_filter, x):
    """Equivalent of Attention.forward(FWT, x) -> (b, c)."""
    b, c, hi, wi = x.shape
    cf, H, W = constant_filter.shape
    assert cf == c

    if wi <= 1:
        # `while input[0].size(-1) > 1` never executes: just flatten.
        return x.reshape(b, -1)

    f = constant_filter.astype(jnp.float32)
    if (hi, wi) != (H, W):
        # Fold adaptive_avg_pool2d into the filter (single HBM pass over x).
        f = _fold_pool_into_filter(f, hi, wi)

    hw = hi * wi
    x_flat = x.reshape(b, c, hw)        # lane-dense spatial axis
    f_flat = f.reshape(c, hw)

    tb = _pick_batch_tile(b, c, hw, x_flat.dtype.itemsize)
    grid = (pl.cdiv(b, tb),)

    cost = pl.CostEstimate(
        flops=2 * b * c * hw,
        transcendentals=0,
        bytes_accessed=x_flat.size * x_flat.dtype.itemsize
        + f_flat.size * 4
        + b * c * 4,
    )

    out = pl.pallas_call(
        _attention_kernel,
        out_shape=jax.ShapeDtypeStruct((b, c), jnp.float32),
        grid_spec=pl.GridSpec(
            grid=grid,
            in_specs=[
                # x: batch-tiled, double-buffered by the BlockSpec pipeline.
                pl.BlockSpec((tb, c, hw), lambda i: (i, 0, 0)),
                # filter: grid-invariant block index -> stays resident in VMEM.
                pl.BlockSpec((c, hw), lambda i: (0, 0)),
            ],
            out_specs=pl.BlockSpec((tb, c), lambda i: (i, 0)),
        ),
        compiler_params=pltpu.CompilerParams(
            dimension_semantics=("parallel",),       # independent batch tiles
            vmem_limit_bytes=48 * 1024 * 1024,        # headroom, < v7x physical
        ),
        cost_estimate=cost,
    )(x_flat, f_flat)
    return out  # (b, c) -- same as input.view(b, -1) after FWT collapses spatial


# ----------------------------------------------------------------------------
# Demo / correctness check
# ----------------------------------------------------------------------------
if __name__ == "__main__":
    key = jax.random.PRNGKey(0)
    k_filt, k_in, k_in2 = jax.random.split(key, 3)

    B, C, Hs = 2, 4, 16
    constant_filter = build_constant_filter(k_filt, C, Hs)        # (4, 16, 16)

    # Case 1: input spatial == filter spatial (no pooling).
    x = jax.random.normal(k_in, (B, C, Hs, Hs), jnp.float32)      # (2, 4, 16, 16)
    out = jax.block_until_ready(attention_forward(constant_filter, x))
    ref = jnp.sum(constant_filter[None] * x, axis=(-1, -2)).reshape(B, -1)
    assert out.shape == (B, C)
    assert jnp.allclose(out, ref, atol=1e-4, rtol=1e-4)

    # Case 2: larger input -> adaptive_avg_pool2d path (folded into the filter).
    x2 = jax.random.normal(k_in2, (B, C, 2 * Hs, 2 * Hs), jnp.float32)  # (2,4,32,32)
    out2 = jax.block_until_ready(attention_forward(constant_filter, x2))
    pooled = x2.reshape(B, C, Hs, 2, Hs, 2).mean(axis=(3, 5))
    ref2 = jnp.sum(constant_filter[None] * pooled, axis=(-1, -2)).reshape(B, -1)
    assert out2.shape == (B, C)
    assert jnp.allclose(out2, ref2, atol=1e-4, rtol=1e-4)

    print("KERNEL_OK")
</pallas_src>

<mosaic_0001>
module attributes {stable_mosaic.version = 11 : i64} {
  func.func @_attention_kernel(%arg0: i32, %arg1: memref<2x4x256xf32, #tpu.memory_space<vmem>>, %arg2: memref<4x256xf32, #tpu.memory_space<vmem>>, %arg3: memref<2x4xf32, #tpu.memory_space<vmem>>) attributes {dimension_semantics = [#tpu.dimension_semantics<parallel>], iteration_bounds = array<i64: 1>, scalar_prefetch = 0 : i64, scratch_operands = 0 : i64, tpu.core_type = #tpu.core_type<tc>, window_params = [{transform_indices = @transform_0, window_bounds = array<i64: 2, 4, 256>}, {pipeline_mode = #tpu.pipeline_mode<synchronous>, transform_indices = @transform_1, window_bounds = array<i64: 4, 256>}, {transform_indices = @transform_2, window_bounds = array<i64: 2, 4>}]} {
    %c0 = arith.constant 0 : index
    %c0_0 = arith.constant 0 : index
    %c0_1 = arith.constant 0 : index
    %0 = vector.load %arg1[%c0, %c0_0, %c0_1] : memref<2x4x256xf32, #tpu.memory_space<vmem>>, vector<2x4x256xf32>
    %c0_2 = arith.constant 0 : index
    %c0_3 = arith.constant 0 : index
    %1 = vector.load %arg2[%c0_2, %c0_3] : memref<4x256xf32, #tpu.memory_space<vmem>>, vector<4x256xf32>
    %2 = vector.shape_cast %1 : vector<4x256xf32> to vector<1x4x256xf32>
    %3 = vector.broadcast %2 : vector<1x4x256xf32> to vector<2x4x256xf32>
    %4 = arith.mulf %0, %3 : vector<2x4x256xf32>
    %cst = arith.constant dense<0.000000e+00> : vector<2x4xf32>
    %5 = vector.multi_reduction <add>, %4, %cst [2] : vector<2x4x256xf32> to vector<2x4xf32>
    %c0_4 = arith.constant 0 : index
    %c0_5 = arith.constant 0 : index
    %6 = vector.load %arg3[%c0_4, %c0_5] : memref<2x4xf32, #tpu.memory_space<vmem>>, vector<2x4xf32>
    tpu.vector_store %arg3[%c0_4, %c0_5], %5 {strides = array<i32>} : memref<2x4xf32, #tpu.memory_space<vmem>>, vector<2x4xf32>,
    return
  }
  func.func @transform_0(%arg0: i32) -> (i32, i32, i32) {
    %c0_i32 = arith.constant 0 : i32
    %c0_i32_0 = arith.constant 0 : i32
    %c0_i32_1 = arith.constant 0 : i32
    return %arg0, %c0_i32, %c0_i32_0 : i32, i32, i32
  }
  func.func @transform_1(%arg0: i32) -> (i32, i32) {
    %c0_i32 = arith.constant 0 : i32
    %c0_i32_0 = arith.constant 0 : i32
    %c0_i32_1 = arith.constant 0 : i32
    return %c0_i32, %c0_i32_0 : i32, i32
  }
  func.func @transform_2(%arg0: i32) -> (i32, i32) {
    %c0_i32 = arith.constant 0 : i32
    %c0_i32_0 = arith.constant 0 : i32
    return %arg0, %c0_i32 : i32, i32
  }
}

</mosaic_0001>

<llo_original>
// kernel: tpu_custom_call.1
$region0: #{tpu_custom_call.1}
  #allocation0 [shape = 'u32[]', space=smem, size = 0x4, offset = 0x4, fixed_abs, tag = 'smem constant byte address 0x4 - core index']
  #allocation1 [shape = 'u32[72,128]{1,0:T(1,128)}', space=vmem, size = 0x9000, scoped, tag = 'internal scratch']
  %s0 = inlined_call_operand.hbm [shape: f32[2,4,256], index: 0, kind: input, shape index: {}]
  %s1 = inlined_call_operand.hbm [shape: f32[4,256], index: 1, kind: input, shape index: {}]
  %s2 = inlined_call_operand.hbm [shape: f32[2,4], index: 2, kind: output, shape index: {}]
  %s3 = sld [smem:[#allocation0]]
  $region26: #{tpu_custom_call.1} parent=0
    _
  %s5 = ssub.s32 1, %s3
  %s6 = scalar_select 0, %s5, %s3
  $region1: #{tpu_custom_call.1} parent=0
    #allocation2 [shape = 'u8[8192]{0}', space=vmem, size = 0x2000, scoped, tag = 'input window, operand 0, single buffered']
    #allocation3 [shape = 's32[1]{0}', space=sflag, size = 0x4, scoped, tag = 'scoped memory for tpu_custom_call.1']
    #allocation4 [shape = 's32[1]{0}', space=sflag, size = 0x4, scoped, tag = 'scoped memory for tpu_custom_call.1']
    #allocation5 [shape = 'u8[4096]{0}', space=vmem, size = 0x1000, scoped, tag = 'input window, operand 1, single buffered']
    #allocation6 [shape = 's32[1]{0}', space=sflag, size = 0x4, scoped, tag = 'scoped memory for tpu_custom_call.1']
    #allocation7 [shape = 'u8[1024]{0}', space=vmem, size = 0x400, scoped, tag = 'output window, operand 0, single buffered']
    %7 = vsyncpa [#allocation3], 0
    %8 = vsyncpa [#allocation6], 0
    %9 = vsyncpa [#allocation4], 0
    // Predicated region
    $region2: #{tpu_custom_call.1} parent=1 // pred_check
      _
    $region3: #{tpu_custom_call.1} parent=1 // pred_check_branch
      %11 = sbr.rel (0) target = $region5
    $region4: #{tpu_custom_call.1} parent=1 // pred_region
      %13 = vsyncadd [#allocation3], 0
      %s14 = sshll.u32 %s0, 4
      %s15 = int_to_ptr.hbm [resolvable:$true] %s14
      %s16 = sshll.u32 [#allocation2], 4
      %s17 = int_to_ptr.vmem [resolvable:$true] %s16
      %22 = dma.hbm_to_vmem [thread:$0]  %s15, 256, %s17, [#allocation3], 128, 128, 8
    $region5: #{tpu_custom_call.1} parent=1 // pred_fallthru
      _
    // Predicated region
    $region6: #{tpu_custom_call.1} parent=1 // pred_check
      _
    $region7: #{tpu_custom_call.1} parent=1 // pred_check_branch
      %24 = sbr.rel (0) target = $region9
    $region8: #{tpu_custom_call.1} parent=1 // pred_region
      %26 = vsyncadd [#allocation6], 0
      %s28 = sshll.u32 %s1, 4
      %s29 = int_to_ptr.hbm [resolvable:$true] %s28
      %s30 = sshll.u32 [#allocation5], 4
      %s31 = int_to_ptr.vmem [resolvable:$true] %s30
      %33 = dma.hbm_to_vmem [thread:$0]  %s29, 128, %s31, [#allocation6]
    $region9: #{tpu_custom_call.1} parent=1 // pred_fallthru
      _
    // Predicated region
    $region10: #{tpu_custom_call.1} parent=1 // pred_check
      _
    $region11: #{tpu_custom_call.1} parent=1 // pred_check_branch
      %35 = sbr.rel (0) target = $region13
    $region12: #{tpu_custom_call.1} parent=1 // pred_region
      %37 = dma.done [#allocation3], 256
    $region13: #{tpu_custom_call.1} parent=1 // pred_fallthru
      _
    // Predicated region
    $region14: #{tpu_custom_call.1} parent=1 // pred_check
      _
    $region15: #{tpu_custom_call.1} parent=1 // pred_check_branch
      %39 = sbr.rel (0) target = $region17
    $region16: #{tpu_custom_call.1} parent=1 // pred_region
      %41 = dma.done [#allocation6], 128
    $region17: #{tpu_custom_call.1} parent=1 // pred_fallthru
      _
    %v42 = vld [vmem:[#allocation2] sm:$0xff]
    %v43 = vld [vmem:[#allocation2 + $0x8] sm:$0xff]
    %v44 = vld [vmem:[#allocation5] sm:$0xff]
    %v45 = vmul.f32 %v42, %v44
    %v46 = vmul.f32 %v43, %v44
    %49 = vst [vmem:[#allocation1] ss:$2 sm:$0xff] %v45
    %v50 = vld.sshfl [vmem:[#allocation1] sm:$0xff pattern:$0x75316420]
    %v51 = vld.sshfl [vmem:[#allocation1 + $0x8] sm:$0xff pattern:$0x75316420]
    %s52 = scalar_lea.vmem [#allocation1], 16
    %53 = vst [vmem:[%s52] ss:$2 sm:$0xff] %v46
    %v54 = vld.sshfl [vmem:[#allocation1 + $0x10] sm:$0xff pattern:$0x75316420]
    %v55 = vld.sshfl [vmem:[#allocation1 + $0x18] sm:$0xff pattern:$0x75316420]
    %vm60 = vcmask 1043456
    %v61 = vsel %vm60, %v50, 0.0
    %v62 = vsel %vm60, %v51, 0.0
    %v63 = vadd.f32 %v61, %v62
    %64 = vadd.xlane.f32.xlu0 %v63
    %v65 = vpop.xlane.xlu0 %64
    %v66 = vsel %vm60, %v54, 0.0
    %v67 = vsel %vm60, %v55, 0.0
    %v68 = vadd.f32 %v66, %v67
    %69 = vadd.xlane.f32.xlu0 %v68
    %v70 = vpop.xlane.xlu0 %69
    %v73 = vlaneseq
    %v74 = vand.u32 %v73, 127
    %v75 = vperm.slane %v65, %v74
    %v76 = vperm.slane %v70, %v74
    %vm77 = vcmask 1041409
    %v78 = vsel %vm77, %v76, %v75
    %vm80 = vcmask 25600
    %81 = vst.msk [vmem:[#allocation7] sm:$0x3] %vm80, %v78
    // Predicated region
    $region18: #{tpu_custom_call.1} parent=1 // pred_check
      _
    $region19: #{tpu_custom_call.1} parent=1 // pred_check_branch
      %83 = sbr.rel (0) target = $region21
    $region20: #{tpu_custom_call.1} parent=1 // pred_region
      %85 = vsyncadd [#allocation4], 0
      %s87 = sshll.u32 [#allocation7], 4
      %s88 = int_to_ptr.vmem [resolvable:$true] %s87
      %s89 = sshll.u32 %s2, 4
      %s90 = int_to_ptr.hbm [resolvable:$true] %s89
      %92 = dma.vmem_to_hbm [thread:$0]  %s88, 32, %s90, [#allocation4]
    $region21: #{tpu_custom_call.1} parent=1 // pred_fallthru
      _
    // Predicated region
    $region22: #{tpu_custom_call.1} parent=1 // pred_check
      _
    $region23: #{tpu_custom_call.1} parent=1 // pred_check_branch
      %94 = sbr.rel (0) target = $region25
    $region24: #{tpu_custom_call.1} parent=1 // pred_region
      %96 = dma.done [#allocation4], 32
    $region25: #{tpu_custom_call.1} parent=1 // pred_fallthru
      _
    %97 = vsyncpa [#allocation3], 1
    %98 = vsyncpa [#allocation6], 1
    %99 = vsyncpa [#allocation4], 1

</llo_original>
